<compile_context>
chip_gen: v7x
topology: tpu7x:2x2x1
jax: 0.10.0
libtpu: 0.0.40
codegen_flags: <defaults>
</compile_context>

<pallas_src>
import functools
import math

import numpy as np
import jax
import jax.numpy as jnp
from jax import lax
from jax.experimental import pallas as pl
from jax.experimental.pallas import tpu as pltpu

# Safe scoped-VMEM cap for v5e/v6e (128 MiB physical) and v7x (64 MiB physical).
VMEM_LIMIT = 48 * 1024 * 1024


# ----------------------------- small helpers -----------------------------

def _cdiv(a, b):
    return -(-a // b)


def _round_up(x, m):
    return _cdiv(x, m) * m


def _pad2d(a, mp, np_):
    m, n = a.shape
    if m == mp and n == np_:
        return a
    return jnp.pad(a, ((0, mp - m), (0, np_ - n)))


def _row_tiles(M, tm_max):
    # Adaptive row tiling: padding waste < one tile, and >=2 grid steps when
    # possible so both v7x TensorCores get work.
    nm = max(_cdiv(M, tm_max), 2 if M >= 16 else 1)
    tm = _round_up(_cdiv(M, nm), 8)
    return tm, _round_up(M, tm)


# -------------- tiled matmul (+bias, +GELU, +residual, +LayerNorm) --------------

def _make_matmul_kernel(activation, has_residual, has_ln, eps):
    def kernel(*refs):
        x_ref, w_ref, b_ref = refs[0], refs[1], refs[2]
        idx = 3
        res_ref = None
        g_ref = bt_ref = None
        if has_residual:
            res_ref = refs[idx]
            idx += 1
        if has_ln:
            g_ref, bt_ref = refs[idx], refs[idx + 1]
            idx += 2
        o_ref, acc_ref = refs[idx], refs[idx + 1]

        @pl.when(pl.program_id(2) == 0)
        def _():
            acc_ref[...] = jnp.zeros_like(acc_ref)

        acc_ref[...] += jnp.dot(x_ref[...], w_ref[...],
                                preferred_element_type=jnp.float32)

        @pl.when(pl.program_id(2) == pl.num_programs(2) - 1)
        def _():
            y = acc_ref[...] + b_ref[...]
            if activation == "gelu":
                # TODO(synk): torch F.gelu defaults to exact erf-GELU; tanh approx used here.
                c = math.sqrt(2.0 / math.pi)
                y = 0.5 * y * (1.0 + jnp.tanh(c * (y + 0.044715 * y * y * y)))
            if has_residual:
                y = y + res_ref[...].astype(jnp.float32)
            if has_ln:
                mu = jnp.mean(y, axis=-1, keepdims=True)
                yc = y - mu
                var = jnp.mean(yc * yc, axis=-1, keepdims=True)
                y = yc * lax.rsqrt(var + eps) * g_ref[...] + bt_ref[...]
            o_ref[...] = y.astype(o_ref.dtype)

    return kernel


def pallas_matmul(x2d, w, b=None, *, residual=None, ln=None, activation=None,
                  out_dtype=jnp.float32, eps=1e-5, tm=256, tn=256, tk=512):
    """(M,K)@(K,N)+b with bf16 MXU inputs / f32 accumulation, fully tiled.

    Optional fused epilogue: GELU, residual add and LayerNorm (LN requires the
    full N in the output tile, so tn is forced to N in that case).
    """
    M, K = x2d.shape
    N = w.shape[1]

    tm, Mp = _row_tiles(M, tm)
    if ln is not None or N <= tn:
        tn = N                       # full-width output block -> no N padding
    elif N % tn != 0:
        tn = 128
    Np = _round_up(N, tn)
    if K <= tk:
        tk = K
    elif K % tk != 0:
        tk = 128
    Kp = _round_up(K, tk)

    xp = _pad2d(x2d, Mp, Kp).astype(jnp.bfloat16)
    wp = _pad2d(w, Kp, Np).astype(jnp.bfloat16)
    bias = b if b is not None else jnp.zeros((N,), jnp.float32)
    bp = _pad2d(bias.reshape(1, N).astype(jnp.float32), 1, Np)

    in_specs = [pl.BlockSpec((tm, tk), lambda i, j, k: (i, k)),
                pl.BlockSpec((tk, tn), lambda i, j, k: (k, j)),
                pl.BlockSpec((1, tn), lambda i, j, k: (0, j))]
    args = [xp, wp, bp]
    if residual is not None:
        in_specs.append(pl.BlockSpec((tm, tn), lambda i, j, k: (i, j)))
        args.append(_pad2d(residual, Mp, Np))
    if ln is not None:
        g, beta = ln
        in_specs += [pl.BlockSpec((1, tn), lambda i, j, k: (0, j)),
                     pl.BlockSpec((1, tn), lambda i, j, k: (0, j))]
        args += [_pad2d(g.reshape(1, N).astype(jnp.float32), 1, Np),
                 _pad2d(beta.reshape(1, N).astype(jnp.float32), 1, Np)]

    out = pl.pallas_call(
        _make_matmul_kernel(activation, residual is not None, ln is not None, eps),
        grid=(Mp // tm, Np // tn, Kp // tk),
        in_specs=in_specs,
        out_specs=pl.BlockSpec((tm, tn), lambda i, j, k: (i, j)),
        out_shape=jax.ShapeDtypeStruct((Mp, Np), out_dtype),
        scratch_shapes=[pltpu.VMEM((tm, tn), jnp.float32)],
        compiler_params=pltpu.CompilerParams(
            dimension_semantics=("parallel", "parallel", "arbitrary"),
            vmem_limit_bytes=VMEM_LIMIT),
    )(*args)
    if Mp != M or Np != N:
        out = out[:M, :N]
    return out


# --------------------- fused FFN (w1 -> GELU -> w2 -> +res -> LN) ---------------------

def _ffn_kernel(x_ref, w1_ref, b1_ref, w2_ref, b2_ref, g_ref, bt_ref, o_ref, *, eps):
    x = x_ref[...]                                               # (tm, dm) bf16
    h = jnp.dot(x, w1_ref[...], preferred_element_type=jnp.float32) + b1_ref[...]
    c = math.sqrt(2.0 / math.pi)
    h = 0.5 * h * (1.0 + jnp.tanh(c * (h + 0.044715 * h * h * h)))
    y = jnp.dot(h.astype(jnp.bfloat16), w2_ref[...],
                preferred_element_type=jnp.float32) + b2_ref[...]
    y = y + x.astype(jnp.float32)                                # residual add
    mu = jnp.mean(y, axis=-1, keepdims=True)
    yc = y - mu
    var = jnp.mean(yc * yc, axis=-1, keepdims=True)
    o_ref[...] = (yc * lax.rsqrt(var + eps) * g_ref[...] + bt_ref[...]).astype(o_ref.dtype)


def pallas_ffn(x, w1, b1, w2, b2, gamma, beta, *, eps=1e-5,
               out_dtype=jnp.bfloat16, tm=256):
    B, L, dm = x.shape
    dff = w1.shape[1]
    M = B * L
    tm, Mp = _row_tiles(M, tm)
    x2 = x.reshape(M, dm)
    xp = (jnp.pad(x2, ((0, Mp - M), (0, 0))) if Mp != M else x2).astype(jnp.bfloat16)

    out = pl.pallas_call(
        functools.partial(_ffn_kernel, eps=eps),
        grid=(Mp // tm,),
        in_specs=[pl.BlockSpec((tm, dm), lambda i: (i, 0)),
                  pl.BlockSpec((dm, dff), lambda i: (0, 0)),
                  pl.BlockSpec((1, dff), lambda i: (0, 0)),
                  pl.BlockSpec((dff, dm), lambda i: (0, 0)),
                  pl.BlockSpec((1, dm), lambda i: (0, 0)),
                  pl.BlockSpec((1, dm), lambda i: (0, 0)),
                  pl.BlockSpec((1, dm), lambda i: (0, 0))],
        out_specs=pl.BlockSpec((tm, dm), lambda i: (i, 0)),
        out_shape=jax.ShapeDtypeStruct((Mp, dm), out_dtype),
        compiler_params=pltpu.CompilerParams(
            dimension_semantics=("parallel",), vmem_limit_bytes=VMEM_LIMIT),
    )(xp, w1.astype(jnp.bfloat16), b1.reshape(1, dff).astype(jnp.float32),
      w2.astype(jnp.bfloat16), b2.reshape(1, dm).astype(jnp.float32),
      gamma.reshape(1, dm).astype(jnp.float32), beta.reshape(1, dm).astype(jnp.float32))
    return out[:M].reshape(B, L, dm)


# ------------------------------ flash-style attention ------------------------------

def _attention_kernel(q_ref, k_ref, v_ref, o_ref, m_sc, l_sc, acc_sc, *,
                      n_heads, d_head, scale, causal, kv_len, tq, tkv):
    ki = pl.program_id(2)

    @pl.when(ki == 0)
    def _():
        m_sc[...] = jnp.full_like(m_sc, -1e30)
        l_sc[...] = jnp.zeros_like(l_sc)
        acc_sc[...] = jnp.zeros_like(acc_sc)

    qf = q_ref[0]                         # (tq, H*Dh) bf16
    kf = k_ref[0]                         # (tkv, H*Dh) bf16
    vf = v_ref[0]

    col = ki * tkv + lax.broadcasted_iota(jnp.int32, (tq, tkv), 1)
    valid = col < kv_len
    if causal:
        row = pl.program_id(1) * tq + lax.broadcasted_iota(jnp.int32, (tq, tkv), 0)
        valid = jnp.logical_and(valid, col <= row)

    # TODO(synk): ProbAttention (top-u sparse query selection) approximated by dense attention.
    alpha_stripes, pv_stripes = [], []
    for h in range(n_heads):              # static unroll over heads
        lo, hi = h * d_head, (h + 1) * d_head
        s = lax.dot_general(qf[:, lo:hi], kf[:, lo:hi], (((1,), (1,)), ((), ())),
                            preferred_element_type=jnp.float32) * scale
        s = jnp.where(valid, s, jnp.float32(-1e30))
        m_prev = m_sc[h]                                        # (tq, 1)
        m_new = jnp.maximum(m_prev, jnp.max(s, axis=-1, keepdims=True))
        alpha = jnp.exp(m_prev - m_new)
        p = jnp.where(valid, jnp.exp(s - m_new), 0.0)
        l_sc[h] = alpha * l_sc[h] + jnp.sum(p, axis=-1, keepdims=True)
        m_sc[h] = m_new
        pv = lax.dot_general(p.astype(vf.dtype), vf[:, lo:hi],
                             (((1,), (0,)), ((), ())),
                             preferred_element_type=jnp.float32)
        alpha_stripes.append(jnp.broadcast_to(alpha, (tq, d_head)))
        pv_stripes.append(pv)

    # single lane-dense (tq, H*Dh) scratch update (no per-head stores)
    acc_sc[...] = (jnp.concatenate(alpha_stripes, axis=1) * acc_sc[...]
                   + jnp.concatenate(pv_stripes, axis=1))

    @pl.when(ki == pl.num_programs(2) - 1)
    def _():
        inv_full = jnp.concatenate(
            [jnp.broadcast_to(pl.reciprocal(l_sc[h], approx=True), (tq, d_head))
             for h in range(n_heads)], axis=1)
        o_ref[0] = (acc_sc[...] * inv_full).astype(o_ref.dtype)   # one dense HBM store


def pallas_attention(q, k, v, n_heads, causal, *, out_dtype=jnp.bfloat16,
                     tq_max=256, tkv_max=256):
    # q: (B, L, H*Dh), k/v: (B, S, H*Dh), concat-head layout -> (B, L, H*Dh)
    B, L, dm = q.shape
    S = k.shape[1]
    Dh = dm // n_heads

    nq = _cdiv(L, tq_max)
    tq = _round_up(_cdiv(L, nq), 8)
    Lp = _round_up(L, tq)
    nk = _cdiv(S, tkv_max)
    tkv = _round_up(_cdiv(S, nk), 8)
    Sp = _round_up(S, tkv)

    qp = (jnp.pad(q, ((0, 0), (0, Lp - L), (0, 0))) if Lp != L else q).astype(jnp.bfloat16)
    kp = (jnp.pad(k, ((0, 0), (0, Sp - S), (0, 0))) if Sp != S else k).astype(jnp.bfloat16)
    vp = (jnp.pad(v, ((0, 0), (0, Sp - S), (0, 0))) if Sp != S else v).astype(jnp.bfloat16)

    out = pl.pallas_call(
        functools.partial(_attention_kernel, n_heads=n_heads, d_head=Dh,
                          scale=1.0 / math.sqrt(Dh), causal=causal,
                          kv_len=S, tq=tq, tkv=tkv),
        grid=(B, Lp // tq, Sp // tkv),
        in_specs=[pl.BlockSpec((1, tq, dm), lambda b, qi, ki: (b, qi, 0)),
                  pl.BlockSpec((1, tkv, dm), lambda b, qi, ki: (b, ki, 0)),
                  pl.BlockSpec((1, tkv, dm), lambda b, qi, ki: (b, ki, 0))],
        out_specs=pl.BlockSpec((1, tq, dm), lambda b, qi, ki: (b, qi, 0)),
        out_shape=jax.ShapeDtypeStruct((B, Lp, dm), out_dtype),
        scratch_shapes=[pltpu.VMEM((n_heads, tq, 1), jnp.float32),
                        pltpu.VMEM((n_heads, tq, 1), jnp.float32),
                        pltpu.VMEM((tq, dm), jnp.float32)],
        compiler_params=pltpu.CompilerParams(
            dimension_semantics=("parallel", "parallel", "arbitrary"),
            vmem_limit_bytes=VMEM_LIMIT),
    )(qp, kp, vp)
    if Lp != L:
        out = out[:, :L, :]
    return out


# -------------------- row-tiled LayerNorm / BN-affine+ELU --------------------

def _row_tiled_call(kernel, row_arrays, bcast_arrays, out_dtype, tm_max=512):
    M, D = row_arrays[0].shape
    tm, Mp = _row_tiles(M, tm_max)
    ins = [jnp.pad(a, ((0, Mp - M), (0, 0))) if Mp != M else a for a in row_arrays]
    ins += [a.reshape(1, D).astype(jnp.float32) for a in bcast_arrays]
    in_specs = ([pl.BlockSpec((tm, D), lambda i: (i, 0)) for _ in row_arrays]
                + [pl.BlockSpec((1, D), lambda i: (0, 0)) for _ in bcast_arrays])
    out = pl.pallas_call(
        kernel,
        grid=(Mp // tm,),
        in_specs=in_specs,
        out_specs=pl.BlockSpec((tm, D), lambda i: (i, 0)),
        out_shape=jax.ShapeDtypeStruct((Mp, D), out_dtype),
        compiler_params=pltpu.CompilerParams(
            dimension_semantics=("parallel",), vmem_limit_bytes=VMEM_LIMIT),
    )(*ins)
    return out[:M]


def _ln_kernel(x_ref, g_ref, b_ref, o_ref, *, eps):
    x = x_ref[...].astype(jnp.float32)
    mu = jnp.mean(x, axis=-1, keepdims=True)
    xc = x - mu
    var = jnp.mean(xc * xc, axis=-1, keepdims=True)
    o_ref[...] = (xc * lax.rsqrt(var + eps) * g_ref[...] + b_ref[...]).astype(o_ref.dtype)


def _affine_elu_kernel(x_ref, s_ref, t_ref, o_ref):
    y = x_ref[...].astype(jnp.float32) * s_ref[...] + t_ref[...]
    o_ref[...] = jnp.where(y > 0, y, jnp.exp(jnp.minimum(y, 0.0)) - 1.0).astype(o_ref.dtype)


def pallas_layernorm(x, gamma, beta, eps=1e-5, out_dtype=jnp.float32):
    shp = x.shape
    D = shp[-1]
    out = _row_tiled_call(functools.partial(_ln_kernel, eps=eps),
                          [x.reshape(-1, D)], [gamma, beta], out_dtype)
    return out.reshape(shp)


def pallas_affine_elu(x, scale, shift, out_dtype=jnp.bfloat16):
    B, L, C = x.shape
    out = _row_tiled_call(_affine_elu_kernel, [x.reshape(-1, C)], [scale, shift],
                          out_dtype)
    return out.reshape(B, L, C)


# --------------------- circular conv1d (k=3) kernel -----------------------

def _circular_conv_kernel(x_ref, w_ref, b_ref, o_ref):
    # x_ref: (1, L, Cin); shifts built in-VMEM with pltpu.roll (no HBM circular pad).
    xc = x_ref[0]                                   # (L, Cin) bf16
    x32 = xc.astype(jnp.float32)
    L = x32.shape[0]
    xm = pltpu.roll(x32, shift=1, axis=0).astype(jnp.bfloat16)       # row l -> x[l-1]
    xp = pltpu.roll(x32, shift=L - 1, axis=0).astype(jnp.bfloat16)   # row l -> x[l+1]
    acc = jnp.dot(xm, w_ref[0], preferred_element_type=jnp.float32)
    acc = acc + jnp.dot(xc, w_ref[1], preferred_element_type=jnp.float32)
    acc = acc + jnp.dot(xp, w_ref[2], preferred_element_type=jnp.float32)
    o_ref[0] = (acc + b_ref[...]).astype(o_ref.dtype)


def pallas_circular_conv(x, w_torch, b=None, out_dtype=jnp.bfloat16):
    # x: (B, L, Cin); w_torch: (Cout, Cin, 3); padding=1, padding_mode='circular'
    B, L, Cin = x.shape
    Cout = w_torch.shape[0]
    w3 = jnp.transpose(w_torch, (2, 1, 0)).astype(jnp.bfloat16)   # (3, Cin, Cout); tap k hits x[l+k-1]
    bias = (b if b is not None else jnp.zeros((Cout,), jnp.float32))
    bias = bias.reshape(1, Cout).astype(jnp.float32)
    return pl.pallas_call(
        _circular_conv_kernel,
        grid=(B,),
        in_specs=[pl.BlockSpec((1, L, Cin), lambda i: (i, 0, 0)),
                  pl.BlockSpec((3, Cin, Cout), lambda i: (0, 0, 0)),
                  pl.BlockSpec((1, Cout), lambda i: (0, 0))],
        out_specs=pl.BlockSpec((1, L, Cout), lambda i: (i, 0, 0)),
        out_shape=jax.ShapeDtypeStruct((B, L, Cout), out_dtype),
        compiler_params=pltpu.CompilerParams(
            dimension_semantics=("parallel",), vmem_limit_bytes=VMEM_LIMIT),
    )(x.astype(jnp.bfloat16), w3, bias)


# ----------------------------- glue helpers -----------------------------

def sinusoidal_table(n, d_model):
    pos = np.arange(n, dtype=np.float32)[:, None]
    div = np.exp(np.arange(0, d_model, 2, dtype=np.float32)
                 * -(math.log(10000.0) / d_model))
    tbl = np.zeros((n, d_model), dtype=np.float32)
    tbl[:, 0::2] = np.sin(pos * div)
    tbl[:, 1::2] = np.cos(pos * div)
    return jnp.asarray(tbl)


def maxpool1d_k3_s2_p1(x):
    # nn.MaxPool1d(kernel_size=3, stride=2, padding=1), channel-last layout
    B, L, C = x.shape
    xp = jnp.pad(x, ((0, 0), (1, 1), (0, 0)), constant_values=-jnp.inf)
    out_len = (L + 2 - 3) // 2 + 1
    idx = jnp.arange(out_len) * 2
    w = jnp.stack([xp[:, idx + k, :] for k in range(3)], axis=0)
    return jnp.max(w, axis=0)


# ----------------------------- model pieces -----------------------------

def data_embedding(p, x, duration, x_mark, tables):
    B, L, _ = x.shape
    d_model = p["token_w"].shape[0]
    val = pallas_circular_conv(x, p["token_w"])          # TokenEmbedding (no bias)
    pos = sinusoidal_table(L, d_model)[None, :, :]       # PositionalEmbedding
    month, day, weekday, hour = tables                   # fixed temporal embeddings
    temp = (jnp.take(month, x_mark[..., 0], axis=0)
            + jnp.take(day, x_mark[..., 1], axis=0)
            + jnp.take(weekday, x_mark[..., 2], axis=0)
            + jnp.take(hour, x_mark[..., 3], axis=0))
    # TODO(synk): the repo's duration-embedding sub-module is unavailable; modeled as Linear(1, d_model) in glue.
    dur = duration @ p["dur_w"] + p["dur_b"]
    return (val + pos + temp + dur).astype(jnp.bfloat16)


def attention_layer(p, q_in, kv_in, n_heads, residual, ln, causal, mix,
                    out_dtype=jnp.bfloat16):
    B, L, dm = q_in.shape
    S = kv_in.shape[1]
    H = n_heads
    Dh = dm // H
    if q_in is kv_in:
        # fused QKV projection: one tiled matmul, lane-dense 3*d_model output, bf16 out
        w_qkv = jnp.concatenate([p["wq"], p["wk"], p["wv"]], axis=1)
        b_qkv = jnp.concatenate([p["bq"], p["bk"], p["bv"]])
        qkv = pallas_matmul(q_in.reshape(B * L, dm), w_qkv, b_qkv,
                            out_dtype=jnp.bfloat16)
        q = qkv[:, :dm].reshape(B, L, dm)
        k = qkv[:, dm:2 * dm].reshape(B, S, dm)
        v = qkv[:, 2 * dm:].reshape(B, S, dm)
    else:
        q = pallas_matmul(q_in.reshape(B * L, dm), p["wq"], p["bq"],
                          out_dtype=jnp.bfloat16).reshape(B, L, dm)
        w_kv = jnp.concatenate([p["wk"], p["wv"]], axis=1)
        b_kv = jnp.concatenate([p["bk"], p["bv"]])
        kv = pallas_matmul(kv_in.reshape(B * S, dm), w_kv, b_kv,
                           out_dtype=jnp.bfloat16)
        k = kv[:, :dm].reshape(B, S, dm)
        v = kv[:, dm:].reshape(B, S, dm)

    o = pallas_attention(q, k, v, n_heads=H, causal=causal)   # (B, L, H*Dh) bf16
    if mix:
        # TODO(synk): mix=True head-major relayout kept in XLA (kernel store stays lane-dense).
        o = o.reshape(B, L, H, Dh).transpose(0, 2, 1, 3).reshape(B, L, H * Dh)
    # output projection with residual add + LayerNorm fused into the matmul epilogue
    out = pallas_matmul(o.reshape(B * L, dm), p["wo"], p["bo"],
                        residual=residual.reshape(B * L, dm), ln=ln,
                        out_dtype=out_dtype)
    return out.reshape(B, L, dm)


def encoder_layer(p, x, n_heads):
    x = attention_layer(p["attn"], x, x, n_heads, residual=x,
                        ln=(p["ln1_g"], p["ln1_b"]), causal=False, mix=False)
    # fused FFN: GELU(x@w1)@w2 + residual + LayerNorm in one kernel
    return pallas_ffn(x, p["w1"], p["b1"], p["w2"], p["b2"],
                      p["ln2_g"], p["ln2_b"], out_dtype=jnp.bfloat16)


def conv_layer(p, x):
    y = pallas_circular_conv(x, p["conv_w"], p["conv_b"])
    # TODO(synk): BatchNorm uses training-mode batch statistics (no running stats available);
    # the per-channel reduction stays in XLA, the affine+ELU apply is a row-tiled Pallas kernel.
    yf = y.astype(jnp.float32)
    mean = jnp.mean(yf, axis=(0, 1))
    var = jnp.mean(jnp.square(yf - mean), axis=(0, 1))
    scale = p["bn_g"] * lax.rsqrt(var + 1e-5)
    shift = p["bn_b"] - mean * scale
    y = pallas_affine_elu(y, scale, shift)
    return maxpool1d_k3_s2_p1(y)


def encoder(p, x, n_heads):
    for lp, cp in zip(p["layers"], p["convs"]):
        x = encoder_layer(lp, x, n_heads)
        x = conv_layer(cp, x)
    x = encoder_layer(p["layers"][-1], x, n_heads)
    return pallas_layernorm(x, p["norm_g"], p["norm_b"], out_dtype=jnp.bfloat16)


def encoder_stack(encoders_p, x, n_heads, inp_lens):
    outs = []
    for i_len, enc_p in zip(inp_lens, encoders_p):
        inp_len = x.shape[1] // (2 ** i_len)
        outs.append(encoder(enc_p, x[:, -inp_len:, :], n_heads))
    return jnp.concatenate(outs, axis=1)


def decoder_layer(p, x, cross, n_heads):
    x = attention_layer(p["self_attn"], x, x, n_heads, residual=x,
                        ln=(p["ln1_g"], p["ln1_b"]), causal=True, mix=True)
    x = attention_layer(p["cross_attn"], x, cross, n_heads, residual=x,
                        ln=(p["ln2_g"], p["ln2_b"]), causal=False, mix=False)
    return pallas_ffn(x, p["w1"], p["b1"], p["w2"], p["b2"],
                      p["ln3_g"], p["ln3_b"], out_dtype=jnp.bfloat16)


def decoder(p, x, cross, n_heads):
    for lp in p["layers"]:
        x = decoder_layer(lp, x, cross, n_heads)
    return pallas_layernorm(x, p["norm_g"], p["norm_b"], out_dtype=jnp.float32)


def informer_stack_forward(params, x_enc, x_mark_enc, x_dec, x_mark_dec,
                           duration_enc, duration_dec, *,
                           n_heads, inp_lens, pred_len, tables):
    enc_out = data_embedding(params["enc_emb"], x_enc, duration_enc, x_mark_enc, tables)
    enc_out = encoder_stack(params["encoders"], enc_out, n_heads, inp_lens)
    dec_out = data_embedding(params["dec_emb"], x_dec, duration_dec, x_mark_dec, tables)
    dec_out = decoder(params["decoder"], dec_out, enc_out, n_heads)
    # Final d_model -> c_out projection: c_out is tiny (lane-sparse), left to XLA.
    proj = dec_out @ params["proj_w"] + params["proj_b"]
    return proj[:, -pred_len:, :]


# ----------------------------- parameter init -----------------------------

def _lin_init(key, din, dout):
    return jax.random.normal(key, (din, dout), jnp.float32) * 0.02


def init_attention_params(key, d_model):
    ks = jax.random.split(key, 4)
    z = jnp.zeros((d_model,), jnp.float32)
    return {"wq": _lin_init(ks[0], d_model, d_model), "bq": z,
            "wk": _lin_init(ks[1], d_model, d_model), "bk": z,
            "wv": _lin_init(ks[2], d_model, d_model), "bv": z,
            "wo": _lin_init(ks[3], d_model, d_model), "bo": z}


def init_encoder_layer(key, d_model, d_ff):
    ks = jax.random.split(key, 3)
    return {"attn": init_attention_params(ks[0], d_model),
            "w1": _lin_init(ks[1], d_model, d_ff), "b1": jnp.zeros((d_ff,), jnp.float32),
            "w2": _lin_init(ks[2], d_ff, d_model), "b2": jnp.zeros((d_model,), jnp.float32),
            "ln1_g": jnp.ones((d_model,), jnp.float32), "ln1_b": jnp.zeros((d_model,), jnp.float32),
            "ln2_g": jnp.ones((d_model,), jnp.float32), "ln2_b": jnp.zeros((d_model,), jnp.float32)}


def init_conv_layer(key, d_model):
    return {"conv_w": jax.random.normal(key, (d_model, d_model, 3), jnp.float32) * 0.02,
            "conv_b": jnp.zeros((d_model,), jnp.float32),
            "bn_g": jnp.ones((d_model,), jnp.float32),
            "bn_b": jnp.zeros((d_model,), jnp.float32)}


def init_encoder(key, el, d_model, d_ff):
    ks = jax.random.split(key, 2 * el)
    return {"layers": [init_encoder_layer(ks[i], d_model, d_ff) for i in range(el)],
            "convs": [init_conv_layer(ks[el + i], d_model) for i in range(el - 1)],
            "norm_g": jnp.ones((d_model,), jnp.float32),
            "norm_b": jnp.zeros((d_model,), jnp.float32)}


def init_decoder_layer(key, d_model, d_ff):
    ks = jax.random.split(key, 4)
    ones = jnp.ones((d_model,), jnp.float32)
    zeros = jnp.zeros((d_model,), jnp.float32)
    return {"self_attn": init_attention_params(ks[0], d_model),
            "cross_attn": init_attention_params(ks[1], d_model),
            "w1": _lin_init(ks[2], d_model, d_ff), "b1": jnp.zeros((d_ff,), jnp.float32),
            "w2": _lin_init(ks[3], d_ff, d_model), "b2": zeros,
            "ln1_g": ones, "ln1_b": zeros,
            "ln2_g": ones, "ln2_b": zeros,
            "ln3_g": ones, "ln3_b": zeros}


def init_embedding(key, c_in, d_model):
    ks = jax.random.split(key, 2)
    return {"token_w": jax.random.normal(ks[0], (d_model, c_in, 3), jnp.float32) * 0.02,
            "dur_w": _lin_init(ks[1], 1, d_model),
            "dur_b": jnp.zeros((d_model,), jnp.float32)}


# ----------------------------- demo -----------------------------

if __name__ == "__main__":
    B = 2
    enc_in = dec_in = c_out = 4
    seq_len, label_len, pred_len = 16, 8, 8
    d_model, n_heads, d_ff = 32, 4, 64
    e_layers = [3, 2, 1]
    d_layers = 2
    dec_len = label_len + pred_len
    inp_lens = list(range(len(e_layers)))

    key = jax.random.PRNGKey(0)
    k_param, k_data = jax.random.split(key)
    kp = jax.random.split(k_param, 6)

    params = {
        "enc_emb": init_embedding(kp[0], enc_in, d_model),
        "dec_emb": init_embedding(kp[1], dec_in, d_model),
        "encoders": [init_encoder(k, el, d_model, d_ff)
                     for k, el in zip(jax.random.split(kp[2], len(e_layers)), e_layers)],
        "decoder": {
            "layers": [init_decoder_layer(k, d_model, d_ff)
                       for k in jax.random.split(kp[3], d_layers)],
            "norm_g": jnp.ones((d_model,), jnp.float32),
            "norm_b": jnp.zeros((d_model,), jnp.float32),
        },
        "proj_w": _lin_init(kp[4], d_model, c_out),
        "proj_b": jnp.zeros((c_out,), jnp.float32),
    }

    tables = (sinusoidal_table(13, d_model),   # month
              sinusoidal_table(32, d_model),   # day
              sinusoidal_table(7, d_model),    # weekday
              sinusoidal_table(24, d_model))   # hour  (freq='h', embed='fixed')

    kd = jax.random.split(k_data, 8)
    x_enc = jax.random.normal(kd[0], (B, seq_len, enc_in), jnp.float32)
    x_dec = jax.random.normal(kd[1], (B, dec_len, dec_in), jnp.float32)
    x_mark_enc = jnp.stack([jax.random.randint(kd[2], (B, seq_len), 0, 13),
                            jax.random.randint(kd[3], (B, seq_len), 0, 32),
                            jax.random.randint(kd[4], (B, seq_len), 0, 7),
                            jax.random.randint(kd[5], (B, seq_len), 0, 24)], axis=-1)
    x_mark_dec = jnp.stack([jax.random.randint(kd[2], (B, dec_len), 0, 13),
                            jax.random.randint(kd[3], (B, dec_len), 0, 32),
                            jax.random.randint(kd[4], (B, dec_len), 0, 7),
                            jax.random.randint(kd[5], (B, dec_len), 0, 24)], axis=-1)
    duration_enc = jax.random.uniform(kd[6], (B, seq_len, 1), jnp.float32)
    duration_dec = jax.random.uniform(kd[7], (B, dec_len, 1), jnp.float32)

    out = informer_stack_forward(params, x_enc, x_mark_enc, x_dec, x_mark_dec,
                                 duration_enc, duration_dec,
                                 n_heads=n_heads, inp_lens=inp_lens,
                                 pred_len=pred_len, tables=tables)
    out = jax.block_until_ready(out)
    assert out.shape == (B, pred_len, c_out), out.shape
    assert bool(jnp.all(jnp.isfinite(out)))
    print("KERNEL_OK")
</pallas_src>

<mosaic_0001>
module attributes {stable_mosaic.version = 11 : i64} {
  func.func @_circular_conv_kernel(%arg0: i32, %arg1: memref<1x16x4xbf16, #tpu.memory_space<vmem>>, %arg2: memref<3x4x32xbf16, #tpu.memory_space<vmem>>, %arg3: memref<1x32xf32, #tpu.memory_space<vmem>>, %arg4: memref<1x16x32xbf16, #tpu.memory_space<vmem>>) attributes {dimension_semantics = [#tpu.dimension_semantics<parallel>], iteration_bounds = array<i64: 2>, scalar_prefetch = 0 : i64, scratch_operands = 0 : i64, tpu.core_type = #tpu.core_type<tc>, window_params = [{transform_indices = @transform_0, window_bounds = array<i64: 1, 16, 4>}, {pipeline_mode = #tpu.pipeline_mode<synchronous>, transform_indices = @transform_1, window_bounds = array<i64: 3, 4, 32>}, {pipeline_mode = #tpu.pipeline_mode<synchronous>, transform_indices = @transform_2, window_bounds = array<i64: 1, 32>}, {transform_indices = @transform_3, window_bounds = array<i64: 1, 16, 32>}]} {
    %c0 = arith.constant 0 : index
    %c0_0 = arith.constant 0 : index
    %c0_1 = arith.constant 0 : index
    %0 = vector.load %arg1[%c0, %c0_0, %c0_1] : memref<1x16x4xbf16, #tpu.memory_space<vmem>>, vector<1x16x4xbf16>
    %1 = vector.shape_cast %0 : vector<1x16x4xbf16> to vector<16x4xbf16>
    %2 = arith.extf %1 : vector<16x4xbf16> to vector<16x4xf32>
    %c1_i32 = arith.constant 1 : i32
    %3 = tpu.dynamic_rotate %2 by %c1_i32 dim 0 : vector<16x4xf32>, i32 -> vector<16x4xf32>
    %4 = arith.truncf %3 : vector<16x4xf32> to vector<16x4xbf16>
    %c15_i32 = arith.constant 15 : i32
    %5 = tpu.dynamic_rotate %2 by %c15_i32 dim 0 : vector<16x4xf32>, i32 -> vector<16x4xf32>
    %6 = arith.truncf %5 : vector<16x4xf32> to vector<16x4xbf16>
    %c0_2 = arith.constant 0 : index
    %c0_3 = arith.constant 0 : index
    %c0_4 = arith.constant 0 : index
    %7 = vector.load %arg2[%c0_2, %c0_3, %c0_4] : memref<3x4x32xbf16, #tpu.memory_space<vmem>>, vector<1x4x32xbf16>
    %8 = vector.shape_cast %7 : vector<1x4x32xbf16> to vector<4x32xbf16>
    %cst = arith.constant dense<0.000000e+00> : vector<16x32xf32>
    %9 = tpu.matmul %4, %8, %cst {dimension_numbers = #tpu.dot_dimension_numbers<[1], [0], [0], [1], [0, 0, 1, 1], [], []>} : vector<16x4xbf16>, vector<4x32xbf16>, vector<16x32xf32> -> vector<16x32xf32>
    %c1 = arith.constant 1 : index
    %c0_5 = arith.constant 0 : index
    %c0_6 = arith.constant 0 : index
    %10 = vector.load %arg2[%c1, %c0_5, %c0_6] : memref<3x4x32xbf16, #tpu.memory_space<vmem>>, vector<1x4x32xbf16>
    %11 = vector.shape_cast %10 : vector<1x4x32xbf16> to vector<4x32xbf16>
    %cst_7 = arith.constant dense<0.000000e+00> : vector<16x32xf32>
    %12 = tpu.matmul %1, %11, %cst_7 {dimension_numbers = #tpu.dot_dimension_numbers<[1], [0], [0], [1], [0, 0, 1, 1], [], []>} : vector<16x4xbf16>, vector<4x32xbf16>, vector<16x32xf32> -> vector<16x32xf32>
    %13 = arith.addf %9, %12 : vector<16x32xf32>
    %c2 = arith.constant 2 : index
    %c0_8 = arith.constant 0 : index
    %c0_9 = arith.constant 0 : index
    %14 = vector.load %arg2[%c2, %c0_8, %c0_9] : memref<3x4x32xbf16, #tpu.memory_space<vmem>>, vector<1x4x32xbf16>
    %15 = vector.shape_cast %14 : vector<1x4x32xbf16> to vector<4x32xbf16>
    %cst_10 = arith.constant dense<0.000000e+00> : vector<16x32xf32>
    %16 = tpu.matmul %6, %15, %cst_10 {dimension_numbers = #tpu.dot_dimension_numbers<[1], [0], [0], [1], [0, 0, 1, 1], [], []>} : vector<16x4xbf16>, vector<4x32xbf16>, vector<16x32xf32> -> vector<16x32xf32>
    %17 = arith.addf %13, %16 : vector<16x32xf32>
    %c0_11 = arith.constant 0 : index
    %c0_12 = arith.constant 0 : index
    %18 = vector.load %arg3[%c0_11, %c0_12] : memref<1x32xf32, #tpu.memory_space<vmem>>, vector<1x32xf32>
    %19 = vector.broadcast %18 : vector<1x32xf32> to vector<16x32xf32>
    %20 = arith.addf %17, %19 : vector<16x32xf32>
    %21 = arith.truncf %20 : vector<16x32xf32> to vector<16x32xbf16>
    %c0_13 = arith.constant 0 : index
    %c0_14 = arith.constant 0 : index
    %c0_15 = arith.constant 0 : index
    %22 = vector.load %arg4[%c0_13, %c0_14, %c0_15] : memref<1x16x32xbf16, #tpu.memory_space<vmem>>, vector<1x16x32xbf16>
    %23 = vector.shape_cast %22 : vector<1x16x32xbf16> to vector<16x32xbf16>
    %24 = vector.shape_cast %21 : vector<16x32xbf16> to vector<1x16x32xbf16>
    tpu.vector_store %arg4[%c0_13, %c0_14, %c0_15], %24 {strides = array<i32>} : memref<1x16x32xbf16, #tpu.memory_space<vmem>>, vector<1x16x32xbf16>,
    return
  }
  func.func @transform_0(%arg0: i32) -> (i32, i32, i32) {
    %c0_i32 = arith.constant 0 : i32
    %c0_i32_0 = arith.constant 0 : i32
    %c0_i32_1 = arith.constant 0 : i32
    return %arg0, %c0_i32, %c0_i32_0 : i32, i32, i32
  }
  func.func @transform_1(%arg0: i32) -> (i32, i32, i32) {
    %c0_i32 = arith.constant 0 : i32
    %c0_i32_0 = arith.constant 0 : i32
    %c0_i32_1 = arith.constant 0 : i32
    %c0_i32_2 = arith.constant 0 : i32
    return %c0_i32, %c0_i32_0, %c0_i32_1 : i32, i32, i32
  }
  func.func @transform_2(%arg0: i32) -> (i32, i32) {
    %c0_i32 = arith.constant 0 : i32
    %c0_i32_0 = arith.constant 0 : i32
    %c0_i32_1 = arith.constant 0 : i32
    return %c0_i32, %c0_i32_0 : i32, i32
  }
  func.func @transform_3(%arg0: i32) -> (i32, i32, i32) {
    %c0_i32 = arith.constant 0 : i32
    %c0_i32_0 = arith.constant 0 : i32
    %c0_i32_1 = arith.constant 0 : i32
    return %arg0, %c0_i32, %c0_i32_0 : i32, i32, i32
  }
}

</mosaic_0001>

<llo_original>
// kernel: tpu_custom_call.1
$region0: #{tpu_custom_call.1}
  #allocation0 [shape = 'u32[]', space=smem, size = 0x4, offset = 0x4, fixed_abs, tag = 'smem constant byte address 0x4 - core index']
  #allocation1 [shape = 'u32[144,128]{1,0:T(1,128)}', space=vmem, size = 0x12000, scoped, tag = 'internal scratch']
  %s0 = inlined_call_operand.vmem [shape: bf16[2,16,4], index: 0, kind: input, shape index: {}]
  %s1 = inlined_call_operand.vmem [shape: bf16[3,4,32], index: 1, kind: input, shape index: {}]
  %s2 = inlined_call_operand.vmem [shape: f32[1,32], index: 2, kind: input, shape index: {}]
  %s3 = inlined_call_operand.hbm [shape: bf16[2,16,32], index: 3, kind: output, shape index: {}]
  %s4 = sld [smem:[#allocation0]]
  $region45: #{tpu_custom_call.1} parent=0
    _
  %s6 = ssub.s32 1, %s4
  %s7 = scalar_select 0, %s6, %s4
  $region1: #{tpu_custom_call.1} parent=0
    #allocation2 [shape = 'u8[8192]{0}', space=vmem, size = 0x2000, scoped, tag = 'output window, operand 0']
    #allocation3 [shape = 's32[2]{0}', space=sflag, size = 0x8, scoped, tag = 'scoped memory for tpu_custom_call.1']
    %8 = vsyncpa [#allocation3], 0
    %s9 = scalar_lea.sflag [#allocation3], 1
    %10 = vsyncpa %s9, 0
    loop: start=0, step=1, limit=4
    $region2: #{tpu_custom_call.1} parent=1 // loop_pre_header
      _
    $region3: #{tpu_custom_call.1} parent=1 // loop_header
      %s12 = sphi 0, %s16
      %p13 = scmp.ge.s32.totalorder %s12, 4
      %s22 = sphi 0, %s24
      %s25 = sphi 0, %s22
      %s26 = sphi 0, %s25
      %s42 = sphi 0, %s26
      %s46 = sphi 0, %s46
      %s48 = sphi 0, %s46
      %s49 = sphi 0, %s48
      %s63 = sphi 0, %s49
      %s67 = sphi 0, %s67
      %s69 = sphi 0, %s67
      %s70 = sphi 0, %s69
      %s84 = sphi 0, %s70
      %s90 = sphi 0, %s92
      %s93 = sphi 0, %s90
      %s94 = sphi 0, %s93
      %s110 = sphi 0, %s94
    $region4: #{tpu_custom_call.1} parent=1 // loop_header_branch
      %15 = sbr.rel (%p13) target = $region8
    $region5: #{tpu_custom_call.1} parent=1 // loop_body
      %s17 = ssub.s32 %s12, 1
      %s18 = ssub.s32 %s12, 2
      %s19 = sadd.s32 %s12, 1
      %s20 = ssub.s32 %s12, %s19
      %p21 = scmp.eq.s32.totalorder %s20, 0
      %s23 = sadd.s32 %s22, 1
      %s24 = scalar_select %p21, %s22, %s23
      %p27 = pneg %p21
      %p28 = scmp.eq.s32.totalorder %s12, 1
      %p29 = por %p27, %p28
      %p30 = scmp.ne.s32.totalorder %s22, %s25
      %p31 = scmp.eq.s32.totalorder %s12, 0
      %p32 = por %p30, %p31
      %p33 = scmp.ne.s32.totalorder %s22, %s25
      %p34 = scmp.eq.s32.totalorder %s17, 1
      %p35 = por %p33, %p34
      %p36 = scmp.ne.s32.totalorder %s25, %s26
      %p37 = scmp.eq.s32.totalorder %s17, 0
      %p38 = por %p36, %p37
      %p39 = scmp.ne.s32.totalorder %s25, %s26
      %p40 = scmp.eq.s32.totalorder %s18, 1
      %p41 = por %p39, %p40
      %p43 = scmp.ne.s32.totalorder %s26, %s42
      %p44 = scmp.eq.s32.totalorder %s18, 0
      %p45 = por %p43, %p44
      %s47 = sadd.s32 %s46, 1
      %p50 = scmp.eq.s32.totalorder %s12, 1
      %p51 = scmp.ne.s32.totalorder %s46, %s48
      %p52 = scmp.eq.s32.totalorder %s12, 0
      %p53 = por %p51, %p52
      %p54 = scmp.ne.s32.totalorder %s46, %s48
      %p55 = scmp.eq.s32.totalorder %s17, 1
      %p56 = por %p54, %p55
      %p57 = scmp.ne.s32.totalorder %s48, %s49
      %p58 = scmp.eq.s32.totalorder %s17, 0
      %p59 = por %p57, %p58
      %p60 = scmp.ne.s32.totalorder %s48, %s49
      %p61 = scmp.eq.s32.totalorder %s18, 1
      %p62 = por %p60, %p61
      %p64 = scmp.ne.s32.totalorder %s49, %s63
      %p65 = scmp.eq.s32.totalorder %s18, 0
      %p66 = por %p64, %p65
      %s68 = sadd.s32 %s67, 1
      %p71 = scmp.eq.s32.totalorder %s12, 1
      %p72 = scmp.ne.s32.totalorder %s67, %s69
      %p73 = scmp.eq.s32.totalorder %s12, 0
      %p74 = por %p72, %p73
      %p75 = scmp.ne.s32.totalorder %s67, %s69
      %p76 = scmp.eq.s32.totalorder %s17, 1
      %p77 = por %p75, %p76
      %p78 = scmp.ne.s32.totalorder %s69, %s70
      %p79 = scmp.eq.s32.totalorder %s17, 0
      %p80 = por %p78, %p79
      %p81 = scmp.ne.s32.totalorder %s69, %s70
      %p82 = scmp.eq.s32.totalorder %s18, 1
      %p83 = por %p81, %p82
      %p85 = scmp.ne.s32.totalorder %s70, %s84
      %p86 = scmp.eq.s32.totalorder %s18, 0
      %p87 = por %p85, %p86
      %s88 = ssub.s32 %s12, %s19
      %p89 = scmp.eq.s32.totalorder %s88, 0
      %s91 = sadd.s32 %s90, 1
      %s92 = scalar_select %p89, %s90, %s91
      %p95 = pneg %p89
      %p96 = scmp.eq.s32.totalorder %s12, 1
      %p97 = por %p95, %p96
      %p98 = scmp.ne.s32.totalorder %s90, %s93
      %p99 = scmp.eq.s32.totalorder %s12, 0
      %p100 = por %p98, %p99
      %p101 = scmp.ne.s32.totalorder %s90, %s93
      %p102 = scmp.eq.s32.totalorder %s17, 1
      %p103 = por %p101, %p102
      %p104 = scmp.ne.s32.totalorder %s93, %s94
      %p105 = scmp.eq.s32.totalorder %s17, 0
      %p106 = por %p104, %p105
      %p107 = scmp.ne.s32.totalorder %s93, %s94
      %p108 = scmp.eq.s32.totalorder %s18, 1
      %p109 = por %p107, %p108
      %p111 = scmp.ne.s32.totalorder %s94, %s110
      %p112 = scmp.eq.s32.totalorder %s18, 0
      %p113 = por %p111, %p112
      %p114 = scmp.le.s32.totalorder 1, %s12
      %p115 = scmp.lt.s32.totalorder %s12, 3
      %p116 = pnand %p114, %p115
      %p117 = pneg %p116
      // Predicated region
      $region9: #{tpu_custom_call.1} parent=5 // pred_check
        _
      $region10: #{tpu_custom_call.1} parent=5 // pred_check_branch
        %119 = sbr.rel (%p116) target = $region12
      $region11: #{tpu_custom_call.1} parent=5 // pred_region
        %s120 = ssub.s32 %s12, 1
        // Predicated region
        $region13: #{tpu_custom_call.1} parent=11 // pred_check
          %p121 = pneg %p59
        $region14: #{tpu_custom_call.1} parent=11 // pred_check_branch
          %123 = sbr.rel (%p121) target = $region16
        $region15: #{tpu_custom_call.1} parent=11 // pred_region
          _
        $region16: #{tpu_custom_call.1} parent=11 // pred_fallthru
          _
        // Predicated region
        $region17: #{tpu_custom_call.1} parent=11 // pred_check
          %p124 = pneg %p80
        $region18: #{tpu_custom_call.1} parent=11 // pred_check_branch
          %126 = sbr.rel (%p124) target = $region20
        $region19: #{tpu_custom_call.1} parent=11 // pred_region
          _
        $region20: #{tpu_custom_call.1} parent=11 // pred_fallthru
          _
      $region12: #{tpu_custom_call.1} parent=5 // pred_fallthru
        _
      %p127 = scmp.lt.s32.totalorder %s12, 2
      // Predicated region
      $region21: #{tpu_custom_call.1} parent=5 // pred_check
        %p128 = pneg %p127
      $region22: #{tpu_custom_call.1} parent=5 // pred_check_branch
        %130 = sbr.rel (%p128) target = $region24
      $region23: #{tpu_custom_call.1} parent=5 // pred_region
        // Predicated region
        $region25: #{tpu_custom_call.1} parent=23 // pred_check
          %p131 = pneg %p32
        $region26: #{tpu_custom_call.1} parent=23 // pred_check_branch
          %133 = sbr.rel (%p131) target = $region28
        $region27: #{tpu_custom_call.1} parent=23 // pred_region
          %p134 = scmp.lt.s32.totalorder %s12, 1
          %s135 = scalar_select %p134, %s12, 1
          %s136 = smul.addr %s135, 2
          %s137 = smul.addr %s136, 4
          %s138 = scalar_lea.vmem %s0, %s137
        $region28: #{tpu_custom_call.1} parent=23 // pred_fallthru
          _
      $region24: #{tpu_custom_call.1} parent=5 // pred_fallthru
        _
      %p139 = scmp.le.s32.totalorder 1, %s12
      %p140 = scmp.lt.s32.totalorder %s12, 3
      %p141 = pnand %p139, %p140
      %p142 = pneg %p141
      // Predicated region
      $region29: #{tpu_custom_call.1} parent=5 // pred_check
        _
      $region30: #{tpu_custom_call.1} parent=5 // pred_check_branch
        %144 = sbr.rel (%p141) target = $region32
      $region31: #{tpu_custom_call.1} parent=5 // pred_region
        %s145 = ssub.s32 %s12, 1
        %p146 = scmp.lt.s32.totalorder %s17, 1
        %s147 = scalar_select %p146, %s17, 1
        %s148 = smul.addr %s147, 2
        %s149 = smul.addr %s148, 4
        %s150 = scalar_lea.vmem %s0, %s149
        %p151 = pneg %p38
        %p152 = pneg %p35
        %p153 = pneg %p59
        %p154 = pneg %p56
        %p155 = pneg %p80
        %p156 = pneg %p77
        %p157 = pneg %p106
        %p158 = pneg %p103
        %s159 = sand.u32 %s93, 1
        %s160 = scalar_lea.sflag [#allocation3], %s159
        %s161 = sand.u32 %s93, 1
        %s162 = smul.addr %s161, 8
        %s163 = scalar_lea.vmem [#allocation2], %s162
        %p164 = scmp.lt.s32.totalorder %s17, 1
        %s165 = scalar_select %p164, %s17, 1
        %s166 = smul.addr %s165, 2
        %s167 = smul.addr %s166, 4
        %s168 = scalar_lea.vmem %s0, %s167
        %v170 = vld [vmem:[%s168] sm:$0xf]
        %v171 = vld [vmem:[%s168 + $0x4] sm:$0xf]
        %v172 = vunpack.c.l.bf16 %v170
        %v173 = vunpack.c.l.bf16 %v171
        %v174 = vrot.slane %v172, 7
        %v175 = vrot.slane %v173, 7
        %v176 = vlaneseq
        %v177 = vshrl.u32 %v176, 7
        %vm178 = vcmp.lt.s32.totalorder %v177, 1
        %v179 = vsel %vm178, %v174, %v175
        %v180 = vsel %vm178, %v175, %v174
        %v181 = vpack.c.bf16 %v179, %v180
        %v182 = vrot.slane %v172, 1
        %v183 = vrot.slane %v173, 1
        %vm184 = vcmp.lt.s32.totalorder %v177, 7
        %v185 = vsel %vm184, %v182, %v183
        %v186 = vsel %vm184, %v183, %v182
        %v187 = vpack.c.bf16 %v186, %v185
        %v188 = vld [vmem:[%s1] sm:$0x3]
        %s189 = scalar_lea.vmem %s1, 2
        %v190 = vld [vmem:[%s189] sm:$0x3]
        %v193 = vunpack.c.l.b16 %v170
        %v194 = vunpack.c.l.b16 %v171
        %v195 = vpack.c.b16 %v194, %v193
        %vm196 = vcmask 31744
        %v198 = vsel %vm196, %v195, 0
        %vm200 = vcmask 1041408
        %v202 = vsel %vm200, %v190, 0
        %204 = vmatprep.subr.bf16.mxu0 0
        %205 = vmatpush1.bf16.msra.mxu0 %v202
        %206 = vmatprep.subr.bf16.mxu0 0
        %207 = vmatpush1.bf16.msra.mxu0 0
        %208 = vmatprep.subr.bf16.mxu0 0
        %209 = vmatpush1.bf16.msra.mxu0 0
        %210 = vmatprep.subr.bf16.mxu0 0
        %211 = vmatpush1.bf16.msra.mxu0 0
        %212 = vmatprep.subr.bf16.mxu0 0
        %213 = vmatpush1.bf16.msra.mxu0 0
        %214 = vmatprep.subr.bf16.mxu0 0
        %215 = vmatpush1.bf16.msra.mxu0 0
        %216 = vmatprep.subr.bf16.mxu0 0
        %217 = vmatpush1.bf16.msra.mxu0 0
        %218 = vmatprep.subr.bf16.mxu0 0
        %219 = vmatpush1.bf16.msra.mxu0 0
        %220 = vmatprep.subr.bf16.mxu0 0
        %221 = vmatpush1.bf16.msra.mxu0 0
        %222 = vmatprep.subr.bf16.mxu0 0
        %223 = vmatpush1.bf16.msra.mxu0 0
        %224 = vmatprep.subr.bf16.mxu0 0
        %225 = vmatpush1.bf16.msra.mxu0 0
        %226 = vmatprep.subr.bf16.mxu0 0
        %227 = vmatpush1.bf16.msra.mxu0 0
        %228 = vmatprep.subr.bf16.mxu0 0
        %229 = vmatpush1.bf16.msra.mxu0 0
        %230 = vmatprep.subr.bf16.mxu0 0
        %231 = vmatpush1.bf16.msra.mxu0 0
        %232 = vmatprep.subr.bf16.mxu0 0
        %233 = vmatpush1.bf16.msra.mxu0 0
        %234 = vmatprep.subr.bf16.mxu0 0
        %235 = vmatpush1.bf16.msra.mxu0 0
        %236 = vmatprep.mubr.bf16.mxu0 0
        %237 = vmatmul.mubr.bf16.gmra.mrb[0].mxu0 %v198
        %v238 = vpop.f32.mrb[0].mxu0
        %v239 = vadd.f32 0.0, %v238
        %v240 = vpop.f32.mrb[0].mxu0
        %v241 = vpop.f32.mrb[0].mxu0
        %v242 = vadd.f32 0.0, %v241
        %v243 = vpop.f32.mrb[0].mxu0
        %244 = vdwg.mxu0
        %v246 = vsel %vm196, %v181, 0
        %v249 = vsel %vm200, %v188, 0
        %251 = vmatprep.subr.bf16.mxu0 0
        %252 = vmatpush1.bf16.msra.mxu0 %v249
        %253 = vmatprep.subr.bf16.mxu0 0
        %254 = vmatpush1.bf16.msra.mxu0 0
        %255 = vmatprep.subr.bf16.mxu0 0
        %256 = vmatpush1.bf16.msra.mxu0 0
        %257 = vmatprep.subr.bf16.mxu0 0
        %258 = vmatpush1.bf16.msra.mxu0 0
        %259 = vmatprep.subr.bf16.mxu0 0
        %260 = vmatpush1.bf16.msra.mxu0 0
        %261 = vmatprep.subr.bf16.mxu0 0
        %262 = vmatpush1.bf16.msra.mxu0 0
        %263 = vmatprep.subr.bf16.mxu0 0
        %264 = vmatpush1.bf16.msra.mxu0 0
        %265 = vmatprep.subr.bf16.mxu0 0
        %266 = vmatpush1.bf16.msra.mxu0 0
        %267 = vmatprep.subr.bf16.mxu0 0
        %268 = vmatpush1.bf16.msra.mxu0 0
        %269 = vmatprep.subr.bf16.mxu0 0
        %270 = vmatpush1.bf16.msra.mxu0 0
        %271 = vmatprep.subr.bf16.mxu0 0
        %272 = vmatpush1.bf16.msra.mxu0 0
        %273 = vmatprep.subr.bf16.mxu0 0
        %274 = vmatpush1.bf16.msra.mxu0 0
        %275 = vmatprep.subr.bf16.mxu0 0
        %276 = vmatpush1.bf16.msra.mxu0 0
        %277 = vmatprep.subr.bf16.mxu0 0
        %278 = vmatpush1.bf16.msra.mxu0 0
        %279 = vmatprep.subr.bf16.mxu0 0
        %280 = vmatpush1.bf16.msra.mxu0 0
        %281 = vmatprep.subr.bf16.mxu0 0
        %282 = vmatpush1.bf16.msra.mxu0 0
        %283 = vmatprep.mubr.bf16.mxu0 0
        %284 = vmatmul.mubr.bf16.gmra.mrb[0].mxu0 %v246
        %v285 = vpop.f32.mrb[0].mxu0
        %v286 = vadd.f32 %v239, %v285
        %v287 = vpop.f32.mrb[0].mxu0
        %v288 = vpop.f32.mrb[0].mxu0
        %v289 = vadd.f32 %v242, %v288
        %v290 = vpop.f32.mrb[0].mxu0
        %291 = vdwg.mxu0
        %s292 = scalar_lea.vmem %s1, 4
        %v293 = vld [vmem:[%s292] sm:$0x3]
        %v295 = vsel %vm196, %v187, 0
        %v298 = vsel %vm200, %v293, 0
        %300 = vmatprep.subr.bf16.mxu0 0
        %301 = vmatpush1.bf16.msra.mxu0 %v298
        %302 = vmatprep.subr.bf16.mxu0 0
        %303 = vmatpush1.bf16.msra.mxu0 0
        %304 = vmatprep.subr.bf16.mxu0 0
        %305 = vmatpush1.bf16.msra.mxu0 0
        %306 = vmatprep.subr.bf16.mxu0 0
        %307 = vmatpush1.bf16.msra.mxu0 0
        %308 = vmatprep.subr.bf16.mxu0 0
        %309 = vmatpush1.bf16.msra.mxu0 0
        %310 = vmatprep.subr.bf16.mxu0 0
        %311 = vmatpush1.bf16.msra.mxu0 0
        %312 = vmatprep.subr.bf16.mxu0 0
        %313 = vmatpush1.bf16.msra.mxu0 0
        %314 = vmatprep.subr.bf16.mxu0 0
        %315 = vmatpush1.bf16.msra.mxu0 0
        %316 = vmatprep.subr.bf16.mxu0 0
        %317 = vmatpush1.bf16.msra.mxu0 0
        %318 = vmatprep.subr.bf16.mxu0 0
        %319 = vmatpush1.bf16.msra.mxu0 0
        %320 = vmatprep.subr.bf16.mxu0 0
        %321 = vmatpush1.bf16.msra.mxu0 0
        %322 = vmatprep.subr.bf16.mxu0 0
        %323 = vmatpush1.bf16.msra.mxu0 0
        %324 = vmatprep.subr.bf16.mxu0 0
        %325 = vmatpush1.bf16.msra.mxu0 0
        %326 = vmatprep.subr.bf16.mxu0 0
        %327 = vmatpush1.bf16.msra.mxu0 0
        %328 = vmatprep.subr.bf16.mxu0 0
        %329 = vmatpush1.bf16.msra.mxu0 0
        %330 = vmatprep.subr.bf16.mxu0 0
        %331 = vmatpush1.bf16.msra.mxu0 0
        %332 = vmatprep.mubr.bf16.mxu0 0
        %333 = vmatmul.mubr.bf16.gmra.mrb[0].mxu0 %v295
        %v334 = vpop.f32.mrb[0].mxu0
        %v335 = vadd.f32 0.0, %v334
        %v336 = vpop.f32.mrb[0].mxu0
        %v337 = vpop.f32.mrb[0].mxu0
        %v338 = vadd.f32 0.0, %v337
        %v339 = vpop.f32.mrb[0].mxu0
        %340 = vdwg.mxu0
        %v341 = vadd.f32 %v286, %v335
        %v342 = vadd.f32 %v289, %v338
        %v343 = vld [vmem:[%s2] sm:$0x1]
        %v345 = vlaneseq
        %v346 = vshrl.u32 %v345, 7
        %v347 = vsub.s32 0, %v346
        %v348 = vrot.slane %v343, %v347
        %v350 = vadd.f32 %v341, %v348
        %v351 = vadd.f32 %v342, %v348
        %v352 = vpack.c.bf16 %v351, %v350
        %v354 = vunpack.c.l.b16 %v352
        %v355 = vunpack.c.h.b16 %v352
        %v356 = vpack.c.b16 %v354, %v354
        %v357 = vpack.c.b16 %v355, %v355
        %vm360 = vcmask 257024
        %361 = vst.msk [vmem:[%s163] sm:$0xf] %vm360, %v356
        %362 = vst.msk [vmem:[%s163 + $0x4] sm:$0xf] %vm360, %v357
        %s363 = sand.u32 %s93, 1
        %s364 = scalar_lea.sflag [#allocation3], %s363
        %s365 = sand.u32 %s93, 1
        %s366 = smul.addr %s365, 8
        %s367 = scalar_lea.vmem [#allocation2], %s366
        // Predicated region
        $region33: #{tpu_custom_call.1} parent=31 // pred_check
          %p368 = pneg %p103
        $region34: #{tpu_custom_call.1} parent=31 // pred_check_branch
          %370 = sbr.rel (%p368) target = $region36
        $region35: #{tpu_custom_call.1} parent=31 // pred_region
          %s372 = ssub.s32 128, 128
          %373 = vsyncadd %s364, %s372
          %s374 = smul.addr %s17, 2
          %s375 = smul.addr %s374, 64
          %s376 = scalar_lea.hbm %s3, %s375
          %s377 = sshll.u32 %s367, 4
          %s378 = int_to_ptr.vmem [resolvable:$true] %s377
          %383 = dma.vmem_to_hbm [thread:$0]  %s378, 128, %s376, %s364, 64, 64, 4
        $region36: #{tpu_custom_call.1} parent=31 // pred_fallthru
          _
      $region32: #{tpu_custom_call.1} parent=5 // pred_fallthru
        _
      %p384 = scmp.le.s32.totalorder 2, %s12
      // Predicated region
      $region37: #{tpu_custom_call.1} parent=5 // pred_check
        %p385 = pneg %p384
      $region38: #{tpu_custom_call.1} parent=5 // pred_check_branch
        %387 = sbr.rel (%p385) target = $region40
      $region39: #{tpu_custom_call.1} parent=5 // pred_region
        %s388 = ssub.s32 %s12, 2
        // Predicated region
        $region41: #{tpu_custom_call.1} parent=39 // pred_check
          %p389 = pneg %p109
        $region42: #{tpu_custom_call.1} parent=39 // pred_check_branch
          %391 = sbr.rel (%p389) target = $region44
        $region43: #{tpu_custom_call.1} parent=39 // pred_region
          %s392 = sand.u32 %s94, 1
          %s393 = scalar_lea.sflag [#allocation3], %s392
          %s394 = sand.u32 %s94, 1
          %s395 = smul.addr %s394, 8
          %s396 = scalar_lea.vmem [#allocation2], %s395
          %397 = dma.done %s393, 128
        $region44: #{tpu_custom_call.1} parent=39 // pred_fallthru
          _
      $region40: #{tpu_custom_call.1} parent=5 // pred_fallthru
        _
    $region6: #{tpu_custom_call.1} parent=1 // loop_footer
      %s16 = sadd.s32 1, %s12
    $region7: #{tpu_custom_call.1} parent=1 // loop_footer_branch
      %11 = sbr.rel target = $region3
    $region8: #{tpu_custom_call.1} parent=1 // loop_exit
      _
    %398 = vsyncpa [#allocation3], 1
    %s399 = scalar_lea.sflag [#allocation3], 1
    %400 = vsyncpa %s399, 1

</llo_original>
